<compile_context>
chip_gen: v5e
topology: v5e:2x2
jax: 0.10.0
libtpu: 0.0.40
codegen_flags: <defaults>
</compile_context>

<pallas_src>
import jax
import jax.numpy as jnp
from jax.experimental import pallas as pl
from jax.experimental.pallas import tpu as pltpu


def channel_attention_kernel(x_ref, w1t_ref, w2t_ref, o_ref):
    # x_ref:   (Bt, C, HW)
    # w1t_ref: (C, hidden)   fc1.weight pre-transposed in the wrapper
    # w2t_ref: (hidden, C)   fc2.weight pre-transposed in the wrapper
    hw = x_ref.shape[-1]

    # 1) Global average pool over the spatial (lane) axis -> (Bt, C), in f32.
    pool = jnp.sum(x_ref[...].astype(jnp.float32), axis=-1) * (1.0 / hw)

    # 2) FC reduce -> ReLU -> FC expand (MXU M = Bt; no in-kernel transposes).
    #    Tiny vs. the DMA time -- do not tile / tune this path.
    h = jnp.dot(pool, w1t_ref[...], preferred_element_type=jnp.float32)
    h = jnp.maximum(h, 0.0)
    a = jnp.dot(h, w2t_ref[...], preferred_element_type=jnp.float32)

    # 3) Sigmoid gate broadcast over the lane axis.  Re-read x from VMEM here
    #    instead of keeping the multi-MiB block live across the FC stage:
    #    vld slots are idle in this mem-bound kernel and this avoids vreg
    #    spill pressure on large batch tiles.
    gate = jax.nn.sigmoid(a).astype(x_ref.dtype)
    o_ref[...] = (x_ref[...] * gate[:, :, None]).astype(o_ref.dtype)


def _round_up(n, m):
    return ((n + m - 1) // m) * m


def _device_info():
    """(vmem_capacity_bytes, num_tensorcores), with conservative fallbacks."""
    vmem_capacity = 64 * 1024 * 1024          # v7x floor -- safe everywhere
    num_tc = 1
    try:
        info = pltpu.get_tpu_info()
        vmem_capacity = int(getattr(info, "vmem_capacity_bytes", vmem_capacity))
        for name in ("num_tensorcores", "tensorcores_per_chip",
                     "num_cores", "cores_per_chip"):
            v = getattr(info, name, None)
            if v:
                num_tc = int(v)
                break
    except Exception:
        pass
    try:
        # v7x has 2 TensorCores per chip even if TpuInfo doesn't expose it.
        if "v7" in jax.devices()[0].device_kind.lower():
            num_tc = max(num_tc, 2)
    except Exception:
        pass
    return vmem_capacity, num_tc


def _pick_batch_tile(b, c, hw, itemsize, vmem_capacity, num_tc):
    """Batch tile from a generation-aware VMEM budget, (8,128)-padding aware."""
    # Sub-32-bit dtypes pack along sublanes: f32 -> 8, bf16 -> 16, int8 -> 32.
    sub = 8 * max(1, 4 // max(1, itemsize))
    per_image = _round_up(c, sub) * _round_up(hw, 128) * itemsize

    # x gets ~half of VMEM (capped at 48 MiB on 128-MiB parts):
    # in + out, each double-buffered = 4 resident copies of the block.
    x_budget = min(vmem_capacity // 2, 48 * 1024 * 1024)
    max_bt = max(1, x_budget // (4 * per_image))
    max_bt = min(max_bt, b)

    steps = pl.cdiv(b, max_bt)
    if num_tc >= 2 and b >= 2:
        # Keep >= 2 grid steps (and an even count) so both v7x TensorCores get
        # equal work.  On single-TC chips (v5e/v6e) extra steps only add the
        # ~0.35 us per-step overhead, so use the full budget instead.
        if steps < 2:
            steps = 2
        elif steps % 2:
            steps += 1
    bt = pl.cdiv(b, steps)
    return bt, per_image


def channel_attention(x, w1, w2, *, donate_x=False):
    """x: (B, C, H, W); w1: (hidden, C) [fc1.weight]; w2: (C, hidden) [fc2.weight]."""
    b, c, h, w = x.shape
    hidden = w1.shape[0]
    hw = h * w
    x_flat = x.reshape(b, c, hw)
    itemsize = x_flat.dtype.itemsize

    # One-time layout plumbing (tiny arrays): present the PyTorch (out,in)
    # weights so the in-kernel matmuls are plain row-major dots.
    w1t = jnp.transpose(w1)   # (C, hidden)
    w2t = jnp.transpose(w2)   # (hidden, C)

    vmem_capacity, num_tc = _device_info()
    bt, per_image = _pick_batch_tile(b, c, hw, itemsize, vmem_capacity, num_tc)
    # No divisibility requirement: ragged last block is safe (images are
    # independent rows; out-of-bounds stores are masked).
    grid = (pl.cdiv(b, bt),)

    # Padding-aware VMEM accounting: x (in + out, double-buffered) + both
    # weight blocks (counted at 2 buffers to stay safe even if the
    # single-buffer request below is not honored) + headroom.  Cap at the
    # device's *real* capacity (64 MiB on v7x, 128 MiB on v5e/v6e).
    w_itemsize = jnp.dtype(w1.dtype).itemsize
    w_sub = 8 * max(1, 4 // max(1, w_itemsize))
    w1_block = _round_up(c, w_sub) * _round_up(hidden, 128) * w_itemsize
    w2_block = _round_up(hidden, w_sub) * _round_up(c, 128) * w_itemsize
    x_block = bt * per_image
    needed = 4 * x_block + 2 * (w1_block + w2_block) + (2 << 20)
    vmem_limit = int(min(vmem_capacity, max(needed, 32 * 1024 * 1024)))

    def make_call(weight_pipeline_mode):
        w_kwargs = ({} if weight_pipeline_mode is None
                    else {"pipeline_mode": weight_pipeline_mode})
        return pl.pallas_call(
            channel_attention_kernel,
            out_shape=jax.ShapeDtypeStruct((b, c, hw), x.dtype),
            grid=grid,
            in_specs=[
                # Last two block dims equal the full array dims -> (8,128) OK.
                pl.BlockSpec((bt, c, hw), lambda i: (i, 0, 0)),
                # Weights: constant index_map -> resident across grid steps.
                pl.BlockSpec((c, hidden), lambda i: (0, 0), **w_kwargs),
                pl.BlockSpec((hidden, c), lambda i: (0, 0), **w_kwargs),
            ],
            out_specs=pl.BlockSpec((bt, c, hw), lambda i: (i, 0, 0)),
            compiler_params=pltpu.CompilerParams(
                # TODO(synk): if a v7x profile shows a single active TC,
                # switch this axis to pltpu.CORE_PARALLEL.
                dimension_semantics=("parallel",),
                vmem_limit_bytes=vmem_limit,
            ),
            input_output_aliases=({0: 0} if donate_x else {}),
        )

    try:
        # Weights are never re-DMA'd (constant index_map): single-buffer them
        # and hand the saved VMEM back to the x pipeline.
        out_flat = make_call(pl.Buffered(1))(x_flat, w1t, w2t)
    except Exception:
        # Fallback: default (double) buffering for the weight blocks.
        out_flat = make_call(None)(x_flat, w1t, w2t)

    return out_flat.reshape(b, c, h, w)


def channel_attention_ref(x, w1, w2):
    """Pure-JAX reference matching the PyTorch forward (bias=False fc layers)."""
    pool = jnp.mean(x, axis=(2, 3))                 # (B, C)
    attn = jnp.maximum(pool @ w1.T, 0.0)            # (B, hidden)
    attn = jax.nn.sigmoid(attn @ w2.T)              # (B, C)
    return x * attn[:, :, None, None]


if __name__ == "__main__":
    B, C, H, W = 2, 4, 16, 16
    reduction_ratio = 16
    hidden = max(C // reduction_ratio, 4)            # = 4

    key = jax.random.PRNGKey(0)
    kx, k1, k2 = jax.random.split(key, 3)
    x = jax.random.normal(kx, (B, C, H, W), dtype=jnp.float32)
    # PyTorch Linear layout: (out_features, in_features), bias=False per spec.
    w1 = jax.random.normal(k1, (hidden, C), dtype=jnp.float32) * 0.1
    w2 = jax.random.normal(k2, (C, hidden), dtype=jnp.float32) * 0.1

    out = channel_attention(x, w1, w2)
    out = jax.block_until_ready(out)

    ref = channel_attention_ref(x, w1, w2)
    assert out.shape == (B, C, H, W)
    assert jnp.allclose(out, ref, atol=1e-5, rtol=1e-5), "mismatch vs reference"

    print("KERNEL_OK")
</pallas_src>

<mosaic_0001>
module attributes {stable_mosaic.version = 11 : i64} {
  func.func @channel_attention_kernel(%arg0: i32, %arg1: memref<2x4x256xf32, #tpu.memory_space<vmem>>, %arg2: memref<4x4xf32, #tpu.memory_space<vmem>>, %arg3: memref<4x4xf32, #tpu.memory_space<vmem>>, %arg4: memref<2x4x256xf32, #tpu.memory_space<vmem>>) attributes {dimension_semantics = [#tpu.dimension_semantics<parallel>], iteration_bounds = array<i64: 1>, scalar_prefetch = 0 : i64, scratch_operands = 0 : i64, tpu.core_type = #tpu.core_type<tc>, window_params = [{transform_indices = @transform_0, window_bounds = array<i64: 2, 4, 256>}, {pipeline_mode = #tpu.pipeline_mode<synchronous>, transform_indices = @transform_1, window_bounds = array<i64: 4, 4>}, {pipeline_mode = #tpu.pipeline_mode<synchronous>, transform_indices = @transform_2, window_bounds = array<i64: 4, 4>}, {transform_indices = @transform_3, window_bounds = array<i64: 2, 4, 256>}]} {
    %c0 = arith.constant 0 : index
    %c0_0 = arith.constant 0 : index
    %c0_1 = arith.constant 0 : index
    %0 = vector.load %arg1[%c0, %c0_0, %c0_1] : memref<2x4x256xf32, #tpu.memory_space<vmem>>, vector<2x4x256xf32>
    %cst = arith.constant dense<0.000000e+00> : vector<2x4xf32>
    %1 = vector.multi_reduction <add>, %0, %cst [2] : vector<2x4x256xf32> to vector<2x4xf32>
    %cst_2 = arith.constant 3.906250e-03 : f32
    %2 = vector.broadcast %cst_2 : f32 to vector<2x4xf32>
    %3 = arith.mulf %1, %2 : vector<2x4xf32>
    %c0_3 = arith.constant 0 : index
    %c0_4 = arith.constant 0 : index
    %4 = vector.load %arg2[%c0_3, %c0_4] : memref<4x4xf32, #tpu.memory_space<vmem>>, vector<4x4xf32>
    %cst_5 = arith.constant dense<0.000000e+00> : vector<2x4xf32>
    %5 = tpu.matmul %3, %4, %cst_5 {dimension_numbers = #tpu.dot_dimension_numbers<[1], [0], [0], [1], [0, 0, 1, 1], [], []>} : vector<2x4xf32>, vector<4x4xf32>, vector<2x4xf32> -> vector<2x4xf32>
    %cst_6 = arith.constant 0.000000e+00 : f32
    %6 = vector.broadcast %cst_6 : f32 to vector<2x4xf32>
    %7 = arith.maximumf %5, %6 : vector<2x4xf32>
    %c0_7 = arith.constant 0 : index
    %c0_8 = arith.constant 0 : index
    %8 = vector.load %arg3[%c0_7, %c0_8] : memref<4x4xf32, #tpu.memory_space<vmem>>, vector<4x4xf32>
    %cst_9 = arith.constant dense<0.000000e+00> : vector<2x4xf32>
    %9 = tpu.matmul %7, %8, %cst_9 {dimension_numbers = #tpu.dot_dimension_numbers<[1], [0], [0], [1], [0, 0, 1, 1], [], []>} : vector<2x4xf32>, vector<4x4xf32>, vector<2x4xf32> -> vector<2x4xf32>
    %10 = arith.negf %9 : vector<2x4xf32>
    %11 = math.exp %10 : vector<2x4xf32>
    %cst_10 = arith.constant 1.000000e+00 : f32
    %12 = vector.broadcast %cst_10 : f32 to vector<2x4xf32>
    %13 = arith.addf %12, %11 : vector<2x4xf32>
    %14 = arith.divf %12, %13 : vector<2x4xf32>
    %c0_11 = arith.constant 0 : index
    %c0_12 = arith.constant 0 : index
    %c0_13 = arith.constant 0 : index
    %15 = vector.load %arg1[%c0_11, %c0_12, %c0_13] : memref<2x4x256xf32, #tpu.memory_space<vmem>>, vector<2x4x256xf32>
    %16 = vector.shape_cast %14 : vector<2x4xf32> to vector<2x4x1xf32>
    %17 = vector.broadcast %16 : vector<2x4x1xf32> to vector<2x4x256xf32>
    %18 = arith.mulf %15, %17 : vector<2x4x256xf32>
    %c0_14 = arith.constant 0 : index
    %c0_15 = arith.constant 0 : index
    %c0_16 = arith.constant 0 : index
    %19 = vector.load %arg4[%c0_14, %c0_15, %c0_16] : memref<2x4x256xf32, #tpu.memory_space<vmem>>, vector<2x4x256xf32>
    tpu.vector_store %arg4[%c0_14, %c0_15, %c0_16], %18 {strides = array<i32>} : memref<2x4x256xf32, #tpu.memory_space<vmem>>, vector<2x4x256xf32>,
    return
  }
  func.func @transform_0(%arg0: i32) -> (i32, i32, i32) {
    %c0_i32 = arith.constant 0 : i32
    %c0_i32_0 = arith.constant 0 : i32
    %c0_i32_1 = arith.constant 0 : i32
    return %arg0, %c0_i32, %c0_i32_0 : i32, i32, i32
  }
  func.func @transform_1(%arg0: i32) -> (i32, i32) {
    %c0_i32 = arith.constant 0 : i32
    %c0_i32_0 = arith.constant 0 : i32
    %c0_i32_1 = arith.constant 0 : i32
    return %c0_i32, %c0_i32_0 : i32, i32
  }
  func.func @transform_2(%arg0: i32) -> (i32, i32) {
    %c0_i32 = arith.constant 0 : i32
    %c0_i32_0 = arith.constant 0 : i32
    %c0_i32_1 = arith.constant 0 : i32
    return %c0_i32, %c0_i32_0 : i32, i32
  }
  func.func @transform_3(%arg0: i32) -> (i32, i32, i32) {
    %c0_i32 = arith.constant 0 : i32
    %c0_i32_0 = arith.constant 0 : i32
    %c0_i32_1 = arith.constant 0 : i32
    return %arg0, %c0_i32, %c0_i32_0 : i32, i32, i32
  }
}

module attributes {stable_mosaic.version = 11 : i64} {
  func.func @channel_attention_kernel(%arg0: i32, %arg1: memref<2x4x256xf32, #tpu.memory_space<vmem>>, %arg2: memref<4x4xf32, #tpu.memory_space<vmem>>, %arg3: memref<4x4xf32, #tpu.memory_space<vmem>>, %arg4: memref<2x4x256xf32, #tpu.memory_space<vmem>>) attributes {dimension_semantics = [#tpu.dimension_semantics<parallel>], iteration_bounds = array<i64: 1>, scalar_prefetch = 0 : i64, scratch_operands = 0 : i64, tpu.core_type = #tpu.core_type<tc>, window_params = [{transform_indices = @transform_0, window_bounds = array<i64: 2, 4, 256>}, {pipeline_mode = #tpu.pipeline_mode<synchronous>, transform_indices = @transform_1, window_bounds = array<i64: 4, 4>}, {pipeline_mode = #tpu.pipeline_mode<synchronous>, transform_indices = @transform_2, window_bounds = array<i64: 4, 4>}, {transform_indices = @transform_3, window_bounds = array<i64: 2, 4, 256>}]} {
    %c0 = arith.constant 0 : index
    %c0_0 = arith.constant 0 : index
    %c0_1 = arith.constant 0 : index
    %0 = vector.load %arg1[%c0, %c0_0, %c0_1] : memref<2x4x256xf32, #tpu.memory_space<vmem>>, vector<2x4x256xf32>
    %cst = arith.constant dense<0.000000e+00> : vector<2x4xf32>
    %1 = vector.multi_reduction <add>, %0, %cst [2] : vector<2x4x256xf32> to vector<2x4xf32>
    %cst_2 = arith.constant 3.906250e-03 : f32
    %2 = vector.broadcast %cst_2 : f32 to vector<2x4xf32>
    %3 = arith.mulf %1, %2 : vector<2x4xf32>
    %c0_3 = arith.constant 0 : index
    %c0_4 = arith.constant 0 : index
    %4 = vector.load %arg2[%c0_3, %c0_4] : memref<4x4xf32, #tpu.memory_space<vmem>>, vector<4x4xf32>
    %cst_5 = arith.constant dense<0.000000e+00> : vector<2x4xf32>
    %5 = tpu.matmul %3, %4, %cst_5 {dimension_numbers = #tpu.dot_dimension_numbers<[1], [0], [0], [1], [0, 0, 1, 1], [], []>} : vector<2x4xf32>, vector<4x4xf32>, vector<2x4xf32> -> vector<2x4xf32>
    %cst_6 = arith.constant 0.000000e+00 : f32
    %6 = vector.broadcast %cst_6 : f32 to vector<2x4xf32>
    %7 = arith.maximumf %5, %6 : vector<2x4xf32>
    %c0_7 = arith.constant 0 : index
    %c0_8 = arith.constant 0 : index
    %8 = vector.load %arg3[%c0_7, %c0_8] : memref<4x4xf32, #tpu.memory_space<vmem>>, vector<4x4xf32>
    %cst_9 = arith.constant dense<0.000000e+00> : vector<2x4xf32>
    %9 = tpu.matmul %7, %8, %cst_9 {dimension_numbers = #tpu.dot_dimension_numbers<[1], [0], [0], [1], [0, 0, 1, 1], [], []>} : vector<2x4xf32>, vector<4x4xf32>, vector<2x4xf32> -> vector<2x4xf32>
    %10 = arith.negf %9 : vector<2x4xf32>
    %11 = math.exp %10 : vector<2x4xf32>
    %cst_10 = arith.constant 1.000000e+00 : f32
    %12 = vector.broadcast %cst_10 : f32 to vector<2x4xf32>
    %13 = arith.addf %12, %11 : vector<2x4xf32>
    %14 = arith.divf %12, %13 : vector<2x4xf32>
    %c0_11 = arith.constant 0 : index
    %c0_12 = arith.constant 0 : index
    %c0_13 = arith.constant 0 : index
    %15 = vector.load %arg1[%c0_11, %c0_12, %c0_13] : memref<2x4x256xf32, #tpu.memory_space<vmem>>, vector<2x4x256xf32>
    %16 = vector.shape_cast %14 : vector<2x4xf32> to vector<2x4x1xf32>
    %17 = vector.broadcast %16 : vector<2x4x1xf32> to vector<2x4x256xf32>
    %18 = arith.mulf %15, %17 : vector<2x4x256xf32>
    %c0_14 = arith.constant 0 : index
    %c0_15 = arith.constant 0 : index
    %c0_16 = arith.constant 0 : index
    %19 = vector.load %arg4[%c0_14, %c0_15, %c0_16] : memref<2x4x256xf32, #tpu.memory_space<vmem>>, vector<2x4x256xf32>
    tpu.vector_store %arg4[%c0_14, %c0_15, %c0_16], %18 {strides = array<i32>} : memref<2x4x256xf32, #tpu.memory_space<vmem>>, vector<2x4x256xf32>,
    return
  }
  func.func @transform_0(%arg0: i32) -> (i32, i32, i32) {
    %c0_i32 = arith.constant 0 : i32
    %c0_i32_0 = arith.constant 0 : i32
    %c0_i32_1 = arith.constant 0 : i32
    return %arg0, %c0_i32, %c0_i32_0 : i32, i32, i32
  }
  func.func @transform_1(%arg0: i32) -> (i32, i32) {
    %c0_i32 = arith.constant 0 : i32
    %c0_i32_0 = arith.constant 0 : i32
    %c0_i32_1 = arith.constant 0 : i32
    return %c0_i32, %c0_i32_0 : i32, i32
  }
  func.func @transform_2(%arg0: i32) -> (i32, i32) {
    %c0_i32 = arith.constant 0 : i32
    %c0_i32_0 = arith.constant 0 : i32
    %c0_i32_1 = arith.constant 0 : i32
    return %c0_i32, %c0_i32_0 : i32, i32
  }
  func.func @transform_3(%arg0: i32) -> (i32, i32, i32) {
    %c0_i32 = arith.constant 0 : i32
    %c0_i32_0 = arith.constant 0 : i32
    %c0_i32_1 = arith.constant 0 : i32
    return %arg0, %c0_i32, %c0_i32_0 : i32, i32, i32
  }
}

</mosaic_0001>

<llo_original>
// kernel: tpu_custom_call.1
$region0: #{tpu_custom_call.1}
  #allocation0 [shape = 'u32[]', space=smem, size = 0x4, offset = 0x4, fixed_abs, tag = 'smem constant byte address 0x4 - core index']
  #allocation1 [shape = 'u32[72,128]{1,0:T(1,128)}', space=vmem, size = 0x9000, scoped, tag = 'internal scratch']
  %s0 = inlined_call_operand.hbm [shape: f32[2,4,256], index: 0, kind: input, shape index: {}]
  %s1 = inlined_call_operand.hbm [shape: f32[4,4], index: 1, kind: input, shape index: {}]
  %s2 = inlined_call_operand.hbm [shape: f32[4,4], index: 2, kind: input, shape index: {}]
  %s3 = inlined_call_operand.hbm [shape: f32[2,4,256], index: 3, kind: output, shape index: {}]
  %s4 = sld [smem:[#allocation0]]
  $region34: #{tpu_custom_call.1} parent=0
    _
  %s6 = ssub.s32 1, %s4
  %s7 = scalar_select 0, %s6, %s4
  $region1: #{tpu_custom_call.1} parent=0
    #allocation2 [shape = 'u8[8192]{0}', space=vmem, size = 0x2000, scoped, tag = 'input window, operand 0, single buffered']
    #allocation3 [shape = 's32[1]{0}', space=sflag, size = 0x4, scoped, tag = 'scoped memory for tpu_custom_call.1']
    #allocation4 [shape = 's32[1]{0}', space=sflag, size = 0x4, scoped, tag = 'scoped memory for tpu_custom_call.1']
    #allocation5 [shape = 'u8[2048]{0}', space=vmem, size = 0x800, scoped, tag = 'input window, operand 1, single buffered']
    #allocation6 [shape = 's32[1]{0}', space=sflag, size = 0x4, scoped, tag = 'scoped memory for tpu_custom_call.1']
    #allocation7 [shape = 'u8[2048]{0}', space=vmem, size = 0x800, scoped, tag = 'input window, operand 2, single buffered']
    #allocation8 [shape = 'u8[8192]{0}', space=vmem, size = 0x2000, scoped, tag = 'output window, operand 0, single buffered']
    %8 = vsyncpa [#allocation3], 0
    %9 = vsyncpa [#allocation6], 0
    %10 = vsyncpa [#allocation4], 0
    // Predicated region
    $region2: #{tpu_custom_call.1} parent=1 // pred_check
      _
    $region3: #{tpu_custom_call.1} parent=1 // pred_check_branch
      %12 = sbr.rel (0) target = $region5
    $region4: #{tpu_custom_call.1} parent=1 // pred_region
      %14 = vsyncadd [#allocation3], 0
      %s15 = sshll.u32 %s0, 4
      %s16 = int_to_ptr.hbm [resolvable:$true] %s15
      %s17 = sshll.u32 [#allocation2], 4
      %s18 = int_to_ptr.vmem [resolvable:$true] %s17
      %23 = dma.hbm_to_vmem [thread:$0]  %s16, 256, %s18, [#allocation3], 128, 128, 8
    $region5: #{tpu_custom_call.1} parent=1 // pred_fallthru
      _
    // Predicated region
    $region6: #{tpu_custom_call.1} parent=1 // pred_check
      _
    $region7: #{tpu_custom_call.1} parent=1 // pred_check_branch
      %25 = sbr.rel (0) target = $region9
    $region8: #{tpu_custom_call.1} parent=1 // pred_region
      %27 = vsyncadd [#allocation6], 0
      %s29 = sshll.u32 %s1, 4
      %s30 = int_to_ptr.hbm [resolvable:$true] %s29
      %s31 = sshll.u32 [#allocation5], 4
      %s32 = int_to_ptr.vmem [resolvable:$true] %s31
      %34 = dma.hbm_to_vmem [thread:$0]  %s30, 64, %s32, [#allocation6]
    $region9: #{tpu_custom_call.1} parent=1 // pred_fallthru
      _
    // Predicated region
    $region10: #{tpu_custom_call.1} parent=1 // pred_check
      _
    $region11: #{tpu_custom_call.1} parent=1 // pred_check_branch
      %36 = sbr.rel (0) target = $region13
    $region12: #{tpu_custom_call.1} parent=1 // pred_region
      %38 = vsyncadd [#allocation6], 0
      %s40 = sshll.u32 %s2, 4
      %s41 = int_to_ptr.hbm [resolvable:$true] %s40
      %s42 = sshll.u32 [#allocation7], 4
      %s43 = int_to_ptr.vmem [resolvable:$true] %s42
      %45 = dma.hbm_to_vmem [thread:$0]  %s41, 64, %s43, [#allocation6]
    $region13: #{tpu_custom_call.1} parent=1 // pred_fallthru
      _
    // Predicated region
    $region14: #{tpu_custom_call.1} parent=1 // pred_check
      _
    $region15: #{tpu_custom_call.1} parent=1 // pred_check_branch
      %47 = sbr.rel (0) target = $region17
    $region16: #{tpu_custom_call.1} parent=1 // pred_region
      %49 = dma.done [#allocation3], 256
    $region17: #{tpu_custom_call.1} parent=1 // pred_fallthru
      _
    // Predicated region
    $region18: #{tpu_custom_call.1} parent=1 // pred_check
      _
    $region19: #{tpu_custom_call.1} parent=1 // pred_check_branch
      %51 = sbr.rel (0) target = $region21
    $region20: #{tpu_custom_call.1} parent=1 // pred_region
      %53 = dma.done [#allocation6], 64
    $region21: #{tpu_custom_call.1} parent=1 // pred_fallthru
      _
    // Predicated region
    $region22: #{tpu_custom_call.1} parent=1 // pred_check
      _
    $region23: #{tpu_custom_call.1} parent=1 // pred_check_branch
      %55 = sbr.rel (0) target = $region25
    $region24: #{tpu_custom_call.1} parent=1 // pred_region
      %57 = dma.done [#allocation6], 64
    $region25: #{tpu_custom_call.1} parent=1 // pred_fallthru
      _
    %v58 = vld [vmem:[#allocation2] sm:$0xff]
    %v59 = vld [vmem:[#allocation2 + $0x8] sm:$0xff]
    %62 = vst [vmem:[#allocation1] ss:$2 sm:$0xff] %v58
    %v63 = vld.sshfl [vmem:[#allocation1] sm:$0xff pattern:$0x75316420]
    %v64 = vld.sshfl [vmem:[#allocation1 + $0x8] sm:$0xff pattern:$0x75316420]
    %s65 = scalar_lea.vmem [#allocation1], 16
    %66 = vst [vmem:[%s65] ss:$2 sm:$0xff] %v59
    %v67 = vld.sshfl [vmem:[#allocation1 + $0x10] sm:$0xff pattern:$0x75316420]
    %v68 = vld.sshfl [vmem:[#allocation1 + $0x18] sm:$0xff pattern:$0x75316420]
    %vm73 = vcmask 1043456
    %v74 = vsel %vm73, %v63, 0.0
    %v75 = vsel %vm73, %v64, 0.0
    %v76 = vadd.f32 %v74, %v75
    %77 = vadd.xlane.f32.xlu0 %v76
    %v78 = vpop.xlane.xlu0 %77
    %v79 = vsel %vm73, %v67, 0.0
    %v80 = vsel %vm73, %v68, 0.0
    %v81 = vadd.f32 %v79, %v80
    %82 = vadd.xlane.f32.xlu0 %v81
    %v83 = vpop.xlane.xlu0 %82
    %v84 = vmul.f32 %v78, 0.00390625
    %v85 = vmul.f32 %v83, 0.00390625
    %v86 = vld [vmem:[#allocation5] sm:$0xf]
    %v89 = vlaneseq
    %v90 = vand.u32 %v89, 127
    %v91 = vperm.slane %v84, %v90
    %v92 = vperm.slane %v85, %v90
    %vm93 = vcmask 1041409
    %v94 = vsel %vm93, %v92, %v91
    %vm95 = vcmask 31744
    %v96 = vsel %vm95, %v94, 0
    %v99 = vsel %vm73, %v86, 0
    %101 = vmatpush.msra.mxu0 0.0
    %102 = vmatpush.msra.mxu0 0.0
    %103 = vmatpush.msra.mxu0 0.0
    %104 = vmatpush.msra.mxu0 0.0
    %105 = vmatpush.msra.mxu0 0.0
    %106 = vmatpush.msra.mxu0 0.0
    %107 = vmatpush.msra.mxu0 0.0
    %108 = vmatpush.msra.mxu0 0.0
    %109 = vmatpush.msra.mxu0 0.0
    %110 = vmatpush.msra.mxu0 0.0
    %111 = vmatpush.msra.mxu0 0.0
    %112 = vmatpush.msra.mxu0 0.0
    %113 = vmatpush.msra.mxu0 0.0
    %114 = vmatpush.msra.mxu0 0.0
    %115 = vmatpush.msra.mxu0 0.0
    %116 = vmatpush.msra.mxu0 %v99
    %117 = vmatmul.f32.gmra.mxu0 %v96
    %v118 = vpop.f32.mrf.mxu0
    %v119 = vadd.f32 0.0, %v118
    %120 = vdwg.mxu0
    %v121 = vmax.f32 %v119, 0.0
    %v122 = vld [vmem:[#allocation7] sm:$0xf]
    %v124 = vsel %vm95, %v121, 0
    %v127 = vsel %vm73, %v122, 0
    %129 = vmatpush.msra.mxu0 0.0
    %130 = vmatpush.msra.mxu0 0.0
    %131 = vmatpush.msra.mxu0 0.0
    %132 = vmatpush.msra.mxu0 0.0
    %133 = vmatpush.msra.mxu0 0.0
    %134 = vmatpush.msra.mxu0 0.0
    %135 = vmatpush.msra.mxu0 0.0
    %136 = vmatpush.msra.mxu0 0.0
    %137 = vmatpush.msra.mxu0 0.0
    %138 = vmatpush.msra.mxu0 0.0
    %139 = vmatpush.msra.mxu0 0.0
    %140 = vmatpush.msra.mxu0 0.0
    %141 = vmatpush.msra.mxu0 0.0
    %142 = vmatpush.msra.mxu0 0.0
    %143 = vmatpush.msra.mxu0 0.0
    %144 = vmatpush.msra.mxu0 %v127
    %145 = vmatmul.f32.gmra.mxu0 %v124
    %v146 = vpop.f32.mrf.mxu0
    %v147 = vadd.f32 0.0, %v146
    %148 = vdwg.mxu0
    %v149 = vxor.u32 %v147, 2147483648
    %v150 = vmul.f32 %v149, 1.442695
    %v151 = vpow.pop %v150
    %v152 = vadd.f32 %v151, 1.0
    %v153 = vrcp.pop %v152
    %v154 = vmul.f32 %v152, %v153
    %v155 = vsub.f32 1.0, %v154
    %v156 = vmul.f32 %v153, %v155
    %v157 = vadd.f32 %v153, %v156
    %vm158 = vweird.f32 %v152
    %vm159 = vweird.f32 %v153
    %vm160 = vmor %vm158, %vm159
    %v161 = vsel %vm160, %v153, %v157
    %v162 = vand.u32 2147483647, %v152
    %vm163 = vcmp.eq.f32.partialorder %v162, 8.507059e+37
    %v164 = vand.u32 %v152, 2147483648
    %v165 = vor.u32 1.1754944e-38, %v164
    %v166 = vsel %vm163, %v165, %v161
    %v167 = vmul.f32 1.0, %v166
    %v168 = vperm.slane %v167, 0
    %v169 = vlaneseq
    %v170 = vshrl.u32 %v169, 7
    %172 = vset.pattern.permute.xlu0 %v170
    %173 = vperm.xlu0 %172, %v168
    %v174 = vpop.permute.xlu0 %173
    %v175 = vperm.slane %v167, 1
    %v176 = vlaneseq
    %v177 = vshrl.u32 %v176, 7
    %179 = vset.pattern.permute.xlu0 %v177
    %180 = vperm.xlu0 %179, %v175
    %v181 = vpop.permute.xlu0 %180
    %v185 = vunpack.c.l.s4 839922192
    %v186 = vunpack.c.0.s8 %v185
    %v187 = vperm.slane %v174, %v186
    %v189 = vunpack.c.l.s4 839922192
    %v190 = vunpack.c.0.s8 %v189
    %v191 = vperm.slane %v181, %v190
    %v194 = vmul.f32 %v58, %v187
    %v195 = vmul.f32 %v59, %v191
    %196 = vst [vmem:[#allocation8] sm:$0xff] %v194
    %197 = vst [vmem:[#allocation8 + $0x8] sm:$0xff] %v195
    // Predicated region
    $region26: #{tpu_custom_call.1} parent=1 // pred_check
      _
    $region27: #{tpu_custom_call.1} parent=1 // pred_check_branch
      %199 = sbr.rel (0) target = $region29
    $region28: #{tpu_custom_call.1} parent=1 // pred_region
      %201 = vsyncadd [#allocation4], 0
      %s202 = sshll.u32 [#allocation8], 4
      %s203 = int_to_ptr.vmem [resolvable:$true] %s202
      %s204 = sshll.u32 %s3, 4
      %s205 = int_to_ptr.hbm [resolvable:$true] %s204
      %210 = dma.vmem_to_hbm [thread:$0]  %s203, 256, %s205, [#allocation4], 128, 128, 8
    $region29: #{tpu_custom_call.1} parent=1 // pred_fallthru
      _
    // Predicated region
    $region30: #{tpu_custom_call.1} parent=1 // pred_check
      _
    $region31: #{tpu_custom_call.1} parent=1 // pred_check_branch
      %212 = sbr.rel (0) target = $region33
    $region32: #{tpu_custom_call.1} parent=1 // pred_region
      %214 = dma.done [#allocation4], 256
    $region33: #{tpu_custom_call.1} parent=1 // pred_fallthru
      _
    %215 = vsyncpa [#allocation3], 1
    %216 = vsyncpa [#allocation6], 1
    %217 = vsyncpa [#allocation4], 1

// kernel: tpu_custom_call.1
$region0: #{tpu_custom_call.1}
  #allocation0 [shape = 'u32[]', space=smem, size = 0x4, offset = 0x4, fixed_abs, tag = 'smem constant byte address 0x4 - core index']
  #allocation1 [shape = 'u32[72,128]{1,0:T(1,128)}', space=vmem, size = 0x9000, scoped, tag = 'internal scratch']
  %s0 = inlined_call_operand.hbm [shape: f32[2,4,256], index: 0, kind: input, shape index: {}]
  %s1 = inlined_call_operand.hbm [shape: f32[4,4], index: 1, kind: input, shape index: {}]
  %s2 = inlined_call_operand.hbm [shape: f32[4,4], index: 2, kind: input, shape index: {}]
  %s3 = inlined_call_operand.hbm [shape: f32[2,4,256], index: 3, kind: output, shape index: {}]
  %s4 = sld [smem:[#allocation0]]
  $region34: #{tpu_custom_call.1} parent=0
    _
  %s6 = ssub.s32 1, %s4
  %s7 = scalar_select 0, %s6, %s4
  $region1: #{tpu_custom_call.1} parent=0
    #allocation2 [shape = 'u8[8192]{0}', space=vmem, size = 0x2000, scoped, tag = 'input window, operand 0, single buffered']
    #allocation3 [shape = 's32[1]{0}', space=sflag, size = 0x4, scoped, tag = 'scoped memory for tpu_custom_call.1']
    #allocation4 [shape = 's32[1]{0}', space=sflag, size = 0x4, scoped, tag = 'scoped memory for tpu_custom_call.1']
    #allocation5 [shape = 'u8[2048]{0}', space=vmem, size = 0x800, scoped, tag = 'input window, operand 1, single buffered']
    #allocation6 [shape = 's32[1]{0}', space=sflag, size = 0x4, scoped, tag = 'scoped memory for tpu_custom_call.1']
    #allocation7 [shape = 'u8[2048]{0}', space=vmem, size = 0x800, scoped, tag = 'input window, operand 2, single buffered']
    #allocation8 [shape = 'u8[8192]{0}', space=vmem, size = 0x2000, scoped, tag = 'output window, operand 0, single buffered']
    %8 = vsyncpa [#allocation3], 0
    %9 = vsyncpa [#allocation6], 0
    %10 = vsyncpa [#allocation4], 0
    // Predicated region
    $region2: #{tpu_custom_call.1} parent=1 // pred_check
      _
    $region3: #{tpu_custom_call.1} parent=1 // pred_check_branch
      %12 = sbr.rel (0) target = $region5
    $region4: #{tpu_custom_call.1} parent=1 // pred_region
      %14 = vsyncadd [#allocation3], 0
      %s15 = sshll.u32 %s0, 4
      %s16 = int_to_ptr.hbm [resolvable:$true] %s15
      %s17 = sshll.u32 [#allocation2], 4
      %s18 = int_to_ptr.vmem [resolvable:$true] %s17
      %23 = dma.hbm_to_vmem [thread:$0]  %s16, 256, %s18, [#allocation3], 128, 128, 8
    $region5: #{tpu_custom_call.1} parent=1 // pred_fallthru
      _
    // Predicated region
    $region6: #{tpu_custom_call.1} parent=1 // pred_check
      _
    $region7: #{tpu_custom_call.1} parent=1 // pred_check_branch
      %25 = sbr.rel (0) target = $region9
    $region8: #{tpu_custom_call.1} parent=1 // pred_region
      %27 = vsyncadd [#allocation6], 0
      %s29 = sshll.u32 %s1, 4
      %s30 = int_to_ptr.hbm [resolvable:$true] %s29
      %s31 = sshll.u32 [#allocation5], 4
      %s32 = int_to_ptr.vmem [resolvable:$true] %s31
      %34 = dma.hbm_to_vmem [thread:$0]  %s30, 64, %s32, [#allocation6]
    $region9: #{tpu_custom_call.1} parent=1 // pred_fallthru
      _
    // Predicated region
    $region10: #{tpu_custom_call.1} parent=1 // pred_check
      _
    $region11: #{tpu_custom_call.1} parent=1 // pred_check_branch
      %36 = sbr.rel (0) target = $region13
    $region12: #{tpu_custom_call.1} parent=1 // pred_region
      %38 = vsyncadd [#allocation6], 0
      %s40 = sshll.u32 %s2, 4
      %s41 = int_to_ptr.hbm [resolvable:$true] %s40
      %s42 = sshll.u32 [#allocation7], 4
      %s43 = int_to_ptr.vmem [resolvable:$true] %s42
      %45 = dma.hbm_to_vmem [thread:$0]  %s41, 64, %s43, [#allocation6]
    $region13: #{tpu_custom_call.1} parent=1 // pred_fallthru
      _
    // Predicated region
    $region14: #{tpu_custom_call.1} parent=1 // pred_check
      _
    $region15: #{tpu_custom_call.1} parent=1 // pred_check_branch
      %47 = sbr.rel (0) target = $region17
    $region16: #{tpu_custom_call.1} parent=1 // pred_region
      %49 = dma.done [#allocation3], 256
    $region17: #{tpu_custom_call.1} parent=1 // pred_fallthru
      _
    // Predicated region
    $region18: #{tpu_custom_call.1} parent=1 // pred_check
      _
    $region19: #{tpu_custom_call.1} parent=1 // pred_check_branch
      %51 = sbr.rel (0) target = $region21
    $region20: #{tpu_custom_call.1} parent=1 // pred_region
      %53 = dma.done [#allocation6], 64
    $region21: #{tpu_custom_call.1} parent=1 // pred_fallthru
      _
    // Predicated region
    $region22: #{tpu_custom_call.1} parent=1 // pred_check
      _
    $region23: #{tpu_custom_call.1} parent=1 // pred_check_branch
      %55 = sbr.rel (0) target = $region25
    $region24: #{tpu_custom_call.1} parent=1 // pred_region
      %57 = dma.done [#allocation6], 64
    $region25: #{tpu_custom_call.1} parent=1 // pred_fallthru
      _
    %v58 = vld [vmem:[#allocation2] sm:$0xff]
    %v59 = vld [vmem:[#allocation2 + $0x8] sm:$0xff]
    %62 = vst [vmem:[#allocation1] ss:$2 sm:$0xff] %v58
    %v63 = vld.sshfl [vmem:[#allocation1] sm:$0xff pattern:$0x75316420]
    %v64 = vld.sshfl [vmem:[#allocation1 + $0x8] sm:$0xff pattern:$0x75316420]
    %s65 = scalar_lea.vmem [#allocation1], 16
    %66 = vst [vmem:[%s65] ss:$2 sm:$0xff] %v59
    %v67 = vld.sshfl [vmem:[#allocation1 + $0x10] sm:$0xff pattern:$0x75316420]
    %v68 = vld.sshfl [vmem:[#allocation1 + $0x18] sm:$0xff pattern:$0x75316420]
    %vm73 = vcmask 1043456
    %v74 = vsel %vm73, %v63, 0.0
    %v75 = vsel %vm73, %v64, 0.0
    %v76 = vadd.f32 %v74, %v75
    %77 = vadd.xlane.f32.xlu0 %v76
    %v78 = vpop.xlane.xlu0 %77
    %v79 = vsel %vm73, %v67, 0.0
    %v80 = vsel %vm73, %v68, 0.0
    %v81 = vadd.f32 %v79, %v80
    %82 = vadd.xlane.f32.xlu0 %v81
    %v83 = vpop.xlane.xlu0 %82
    %v84 = vmul.f32 %v78, 0.00390625
    %v85 = vmul.f32 %v83, 0.00390625
    %v86 = vld [vmem:[#allocation5] sm:$0xf]
    %v89 = vlaneseq
    %v90 = vand.u32 %v89, 127
    %v91 = vperm.slane %v84, %v90
    %v92 = vperm.slane %v85, %v90
    %vm93 = vcmask 1041409
    %v94 = vsel %vm93, %v92, %v91
    %vm95 = vcmask 31744
    %v96 = vsel %vm95, %v94, 0
    %v99 = vsel %vm73, %v86, 0
    %101 = vmatpush.msra.mxu0 0.0
    %102 = vmatpush.msra.mxu0 0.0
    %103 = vmatpush.msra.mxu0 0.0
    %104 = vmatpush.msra.mxu0 0.0
    %105 = vmatpush.msra.mxu0 0.0
    %106 = vmatpush.msra.mxu0 0.0
    %107 = vmatpush.msra.mxu0 0.0
    %108 = vmatpush.msra.mxu0 0.0
    %109 = vmatpush.msra.mxu0 0.0
    %110 = vmatpush.msra.mxu0 0.0
    %111 = vmatpush.msra.mxu0 0.0
    %112 = vmatpush.msra.mxu0 0.0
    %113 = vmatpush.msra.mxu0 0.0
    %114 = vmatpush.msra.mxu0 0.0
    %115 = vmatpush.msra.mxu0 0.0
    %116 = vmatpush.msra.mxu0 %v99
    %117 = vmatmul.f32.gmra.mxu0 %v96
    %v118 = vpop.f32.mrf.mxu0
    %v119 = vadd.f32 0.0, %v118
    %120 = vdwg.mxu0
    %v121 = vmax.f32 %v119, 0.0
    %v122 = vld [vmem:[#allocation7] sm:$0xf]
    %v124 = vsel %vm95, %v121, 0
    %v127 = vsel %vm73, %v122, 0
    %129 = vmatpush.msra.mxu0 0.0
    %130 = vmatpush.msra.mxu0 0.0
    %131 = vmatpush.msra.mxu0 0.0
    %132 = vmatpush.msra.mxu0 0.0
    %133 = vmatpush.msra.mxu0 0.0
    %134 = vmatpush.msra.mxu0 0.0
    %135 = vmatpush.msra.mxu0 0.0
    %136 = vmatpush.msra.mxu0 0.0
    %137 = vmatpush.msra.mxu0 0.0
    %138 = vmatpush.msra.mxu0 0.0
    %139 = vmatpush.msra.mxu0 0.0
    %140 = vmatpush.msra.mxu0 0.0
    %141 = vmatpush.msra.mxu0 0.0
    %142 = vmatpush.msra.mxu0 0.0
    %143 = vmatpush.msra.mxu0 0.0
    %144 = vmatpush.msra.mxu0 %v127
    %145 = vmatmul.f32.gmra.mxu0 %v124
    %v146 = vpop.f32.mrf.mxu0
    %v147 = vadd.f32 0.0, %v146
    %148 = vdwg.mxu0
    %v149 = vxor.u32 %v147, 2147483648
    %v150 = vmul.f32 %v149, 1.442695
    %v151 = vpow.pop %v150
    %v152 = vadd.f32 %v151, 1.0
    %v153 = vrcp.pop %v152
    %v154 = vmul.f32 %v152, %v153
    %v155 = vsub.f32 1.0, %v154
    %v156 = vmul.f32 %v153, %v155
    %v157 = vadd.f32 %v153, %v156
    %vm158 = vweird.f32 %v152
    %vm159 = vweird.f32 %v153
    %vm160 = vmor %vm158, %vm159
    %v161 = vsel %vm160, %v153, %v157
    %v162 = vand.u32 2147483647, %v152
    %vm163 = vcmp.eq.f32.partialorder %v162, 8.507059e+37
    %v164 = vand.u32 %v152, 2147483648
    %v165 = vor.u32 1.1754944e-38, %v164
    %v166 = vsel %vm163, %v165, %v161
    %v167 = vmul.f32 1.0, %v166
    %v168 = vperm.slane %v167, 0
    %v169 = vlaneseq
    %v170 = vshrl.u32 %v169, 7
    %172 = vset.pattern.permute.xlu0 %v170
    %173 = vperm.xlu0 %172, %v168
    %v174 = vpop.permute.xlu0 %173
    %v175 = vperm.slane %v167, 1
    %v176 = vlaneseq
    %v177 = vshrl.u32 %v176, 7
    %179 = vset.pattern.permute.xlu0 %v177
    %180 = vperm.xlu0 %179, %v175
    %v181 = vpop.permute.xlu0 %180
    %v185 = vunpack.c.l.s4 839922192
    %v186 = vunpack.c.0.s8 %v185
    %v187 = vperm.slane %v174, %v186
    %v189 = vunpack.c.l.s4 839922192
    %v190 = vunpack.c.0.s8 %v189
    %v191 = vperm.slane %v181, %v190
    %v194 = vmul.f32 %v58, %v187
    %v195 = vmul.f32 %v59, %v191
    %196 = vst [vmem:[#allocation8] sm:$0xff] %v194
    %197 = vst [vmem:[#allocation8 + $0x8] sm:$0xff] %v195
    // Predicated region
    $region26: #{tpu_custom_call.1} parent=1 // pred_check
      _
    $region27: #{tpu_custom_call.1} parent=1 // pred_check_branch
      %199 = sbr.rel (0) target = $region29
    $region28: #{tpu_custom_call.1} parent=1 // pred_region
      %201 = vsyncadd [#allocation4], 0
      %s202 = sshll.u32 [#allocation8], 4
      %s203 = int_to_ptr.vmem [resolvable:$true] %s202
      %s204 = sshll.u32 %s3, 4
      %s205 = int_to_ptr.hbm [resolvable:$true] %s204
      %210 = dma.vmem_to_hbm [thread:$0]  %s203, 256, %s205, [#allocation4], 128, 128, 8
    $region29: #{tpu_custom_call.1} parent=1 // pred_fallthru
      _
    // Predicated region
    $region30: #{tpu_custom_call.1} parent=1 // pred_check
      _
    $region31: #{tpu_custom_call.1} parent=1 // pred_check_branch
      %212 = sbr.rel (0) target = $region33
    $region32: #{tpu_custom_call.1} parent=1 // pred_region
      %214 = dma.done [#allocation4], 256
    $region33: #{tpu_custom_call.1} parent=1 // pred_fallthru
      _
    %215 = vsyncpa [#allocation3], 1
    %216 = vsyncpa [#allocation6], 1
    %217 = vsyncpa [#allocation4], 1

</llo_original>
